<compile_context>
chip_gen: v7x
topology: tpu7x:2x2x1
jax: 0.10.0
libtpu: 0.0.40
codegen_flags: <defaults>
</compile_context>

<pallas_src>
import jax
import jax.numpy as jnp
from jax import lax
from jax.experimental import pallas as pl
from jax.experimental.pallas import tpu as pltpu


def _round_up(x, m):
    return ((x + m - 1) // m) * m


def _embed_onehot_kernel(idx_ref, emb_ref, out_ref, acc_ref):
    # idx_ref: VMEM (1, 1, TB) int32  -- token ids for this token block
    # emb_ref: VMEM (TV, D)           -- current vocabulary chunk
    # out_ref: VMEM (TB, D)           -- output tile for this token block
    # acc_ref: VMEM (TB, D) f32       -- accumulator across vocabulary chunks
    v_blk = pl.program_id(1)
    tv = emb_ref.shape[0]
    tb = idx_ref.shape[-1]

    @pl.when(v_blk == 0)
    def _():
        acc_ref[...] = jnp.zeros_like(acc_ref)

    ids = idx_ref[0]                                    # (1, TB) int32
    local = ids - v_blk * tv                            # id relative to this chunk
    rows = lax.broadcasted_iota(jnp.int32, (tv, tb), 0)
    onehot = (rows == local).astype(emb_ref.dtype)      # (TV, TB)

    # (TV, TB)^T @ (TV, D) -> (TB, D) on the MXU with f32 accumulation.
    acc_ref[...] += lax.dot_general(
        onehot, emb_ref[...],
        dimension_numbers=(((0,), (0,)), ((), ())),
        preferred_element_type=jnp.float32,
        precision=lax.Precision.HIGHEST)

    @pl.when(v_blk == pl.num_programs(1) - 1)
    def _():
        out_ref[...] = acc_ref[...].astype(out_ref.dtype)


def word_embedding_forward(embedding, x, *, block_tokens=512, vocab_chunk=1024):
    """Pallas equivalent of `embedding[x]` for a (V, D) table and int indices x."""
    V, D = embedding.shape
    dtype = embedding.dtype
    item = jnp.dtype(dtype).itemsize

    idx = jnp.clip(x.reshape(-1).astype(jnp.int32), 0, V - 1)
    T = idx.shape[0]

    # ---- token blocking: large lane/sublane-dense output tiles, capped so the
    #      output tile (+ f32 accumulator) stays a few MiB even for wide D.
    tb_cap = max(8, ((8 * 1024 * 1024) // (D * 4)) // 8 * 8)
    tb = min(block_tokens, tb_cap, _round_up(max(T, 1), 8))
    tb = max(8, _round_up(tb, 8))
    n_blocks = -(-T // tb)
    t_pad = n_blocks * tb
    if t_pad != T:
        idx = jnp.pad(idx, (0, t_pad - T))  # padded tokens gather row 0 (sliced off)
    idx3 = idx.reshape(n_blocks, 1, tb)

    # ---- vocabulary chunking: table streamed through VMEM in (TV, D) chunks
    #      (double-buffered by the BlockSpec pipeline) -> no residency cap.
    tv_cap = max(8, ((4 * 1024 * 1024) // (D * item)) // 8 * 8)
    tv_cap = min(vocab_chunk, tv_cap)
    if V <= tv_cap:
        tv = max(8, _round_up(V, 8))
    else:
        tv = tv_cap
    v_pad = _round_up(V, tv)
    emb = embedding
    if v_pad != V:
        emb = jnp.pad(embedding, ((0, v_pad - V), (0, 0)))
    n_v = v_pad // tv
    # TODO(synk): for very large vocabularies where one-hot FLOPs dominate,
    # switch to a manual pl.ANY + make_async_copy row-gather with 4-8 in-flight
    # row DMAs instead of streaming the whole table per token block.

    # ---- VMEM budget, clamped to physical capacity (v7x has only 64 MiB/TC).
    footprint = (2 * tv * D * item          # table chunk (double buffered)
                 + 2 * tb * D * item        # output tile (double buffered)
                 + tb * D * 4               # f32 accumulator scratch
                 + tv * tb * 4              # one-hot temporary (upper bound)
                 + 2 * tb * 4               # index block
                 + (8 << 20))               # compiler headroom
    try:
        phys = int(pltpu.get_tpu_info().vmem_capacity_bytes)
    except Exception:
        phys = 64 << 20
    vmem_limit = int(min(max(footprint, 32 << 20), phys - (4 << 20)))

    out_flat = pl.pallas_call(
        _embed_onehot_kernel,
        out_shape=jax.ShapeDtypeStruct((t_pad, D), dtype),
        grid_spec=pltpu.PrefetchScalarGridSpec(
            num_scalar_prefetch=0,
            grid=(n_blocks, n_v),                       # vocab (reduction) axis last
            in_specs=[
                pl.BlockSpec((1, 1, tb), lambda b, v: (b, 0, 0)),   # token ids
                pl.BlockSpec((tv, D), lambda b, v: (v, 0)),         # table chunk
            ],
            out_specs=pl.BlockSpec((tb, D), lambda b, v: (b, 0)),
            scratch_shapes=[pltpu.VMEM((tb, D), jnp.float32)],
        ),
        compiler_params=pltpu.CompilerParams(
            dimension_semantics=("parallel", "arbitrary"),  # token blocks independent
            vmem_limit_bytes=vmem_limit,
        ),
    )(idx3, emb)

    return out_flat[:T].reshape(x.shape + (D,))


if __name__ == "__main__":
    # Small, deterministic setup consistent with WordEmbeddingNN(vocab, n_emb)
    vocabulary_size = 64
    number_of_embeddings = 128   # lane-friendly embedding width

    key = jax.random.PRNGKey(0)
    k_emb, k_idx = jax.random.split(key)

    # nn.Parameter(torch.randn(V, D)) -> deterministic normal init here
    embedding = jax.random.normal(
        k_emb, (vocabulary_size, number_of_embeddings), dtype=jnp.float32)
    # integer token ids, batch=2, seq=8
    x = jax.random.randint(k_idx, (2, 8), 0, vocabulary_size, dtype=jnp.int32)

    out = word_embedding_forward(embedding, x)
    out = jax.block_until_ready(out)

    # correctness check against the plain-JAX reference of embedding[x]
    ref = embedding[x]
    assert out.shape == (2, 8, number_of_embeddings), out.shape
    assert out.dtype == jnp.float32
    assert jnp.allclose(out, ref, rtol=0.0, atol=1e-6), "mismatch vs reference gather"

    print("KERNEL_OK")
</pallas_src>

<mosaic_0001>
module attributes {stable_mosaic.version = 11 : i64} {
  func.func @_embed_onehot_kernel(%arg0: i32, %arg1: i32, %arg2: memref<1x1x16xi32, #tpu.memory_space<vmem>>, %arg3: memref<64x128xf32, #tpu.memory_space<vmem>>, %arg4: memref<16x128xf32, #tpu.memory_space<vmem>>, %arg5: memref<16x128xf32, #tpu.memory_space<vmem>>) attributes {dimension_semantics = [#tpu.dimension_semantics<parallel>, #tpu.dimension_semantics<arbitrary>], iteration_bounds = array<i64: 1, 1>, scalar_prefetch = 0 : i64, scratch_operands = 1 : i64, tpu.core_type = #tpu.core_type<tc>, window_params = [{transform_indices = @transform_0, window_bounds = array<i64: 1, 1, 16>}, {transform_indices = @transform_1, window_bounds = array<i64: 64, 128>}, {transform_indices = @transform_2, window_bounds = array<i64: 16, 128>}]} {
    %c0_i32 = arith.constant 0 : i32
    %0 = arith.cmpi eq, %arg1, %c0_i32 : i32
    %1 = arith.extui %0 : i1 to i32
    %c0_i32_0 = arith.constant 0 : i32
    %2 = arith.cmpi ne, %1, %c0_i32_0 : i32
    scf.if %2 {
      %cst_11 = arith.constant 0.000000e+00 : f32
      %21 = vector.broadcast %cst_11 : f32 to vector<16x128xf32>
      %c0_12 = arith.constant 0 : index
      %c0_13 = arith.constant 0 : index
      %22 = vector.load %arg5[%c0_12, %c0_13] : memref<16x128xf32, #tpu.memory_space<vmem>>, vector<16x128xf32>
      tpu.vector_store %arg5[%c0_12, %c0_13], %21 {strides = array<i32>} : memref<16x128xf32, #tpu.memory_space<vmem>>, vector<16x128xf32>,
    } else {
    }
    %c0 = arith.constant 0 : index
    %c0_1 = arith.constant 0 : index
    %c0_2 = arith.constant 0 : index
    %3 = vector.load %arg2[%c0, %c0_1, %c0_2] : memref<1x1x16xi32, #tpu.memory_space<vmem>>, vector<1x1x16xi32>
    %4 = vector.shape_cast %3 : vector<1x1x16xi32> to vector<1x16xi32>
    %c64_i32 = arith.constant 64 : i32
    %5 = arith.muli %arg1, %c64_i32 : i32
    %6 = vector.broadcast %5 : i32 to vector<1x16xi32>
    %7 = arith.subi %4, %6 : vector<1x16xi32>
    %8 = tpu.iota {dimensions = array<i32: 0>} : vector<64x16xi32>
    %9 = vector.broadcast %7 : vector<1x16xi32> to vector<64x16xi32>
    %10 = arith.cmpi eq, %8, %9 : vector<64x16xi32>
    %11 = arith.extui %10 : vector<64x16xi1> to vector<64x16xi32>
    %12 = arith.sitofp %11 : vector<64x16xi32> to vector<64x16xf32>
    %c0_3 = arith.constant 0 : index
    %c0_4 = arith.constant 0 : index
    %13 = vector.load %arg5[%c0_3, %c0_4] : memref<16x128xf32, #tpu.memory_space<vmem>>, vector<16x128xf32>
    %c0_5 = arith.constant 0 : index
    %c0_6 = arith.constant 0 : index
    %14 = vector.load %arg3[%c0_5, %c0_6] : memref<64x128xf32, #tpu.memory_space<vmem>>, vector<64x128xf32>
    %cst = arith.constant dense<0.000000e+00> : vector<16x128xf32>
    %15 = tpu.matmul %12, %14, %cst {dimension_numbers = #tpu.dot_dimension_numbers<[0], [0], [1], [1], [0, 1, 1, 1], [], []>, precision = #tpu.contract_precision<fp32>} : vector<64x16xf32>, vector<64x128xf32>, vector<16x128xf32> -> vector<16x128xf32>
    %16 = arith.addf %13, %15 : vector<16x128xf32>
    %c0_7 = arith.constant 0 : index
    %c0_8 = arith.constant 0 : index
    %17 = vector.load %arg5[%c0_7, %c0_8] : memref<16x128xf32, #tpu.memory_space<vmem>>, vector<16x128xf32>
    tpu.vector_store %arg5[%c0_7, %c0_8], %16 {strides = array<i32>} : memref<16x128xf32, #tpu.memory_space<vmem>>, vector<16x128xf32>,
    %c0_i32_9 = arith.constant 0 : i32
    %18 = arith.cmpi eq, %arg1, %c0_i32_9 : i32
    %19 = arith.extui %18 : i1 to i32
    %c0_i32_10 = arith.constant 0 : i32
    %20 = arith.cmpi ne, %19, %c0_i32_10 : i32
    scf.if %20 {
      %c0_11 = arith.constant 0 : index
      %c0_12 = arith.constant 0 : index
      %21 = vector.load %arg5[%c0_11, %c0_12] : memref<16x128xf32, #tpu.memory_space<vmem>>, vector<16x128xf32>
      %c0_13 = arith.constant 0 : index
      %c0_14 = arith.constant 0 : index
      %22 = vector.load %arg4[%c0_13, %c0_14] : memref<16x128xf32, #tpu.memory_space<vmem>>, vector<16x128xf32>
      tpu.vector_store %arg4[%c0_13, %c0_14], %21 {strides = array<i32>} : memref<16x128xf32, #tpu.memory_space<vmem>>, vector<16x128xf32>,
    } else {
    }
    return
  }
  func.func @transform_0(%arg0: i32, %arg1: i32) -> (i32, i32, i32) {
    %c0_i32 = arith.constant 0 : i32
    %c0_i32_0 = arith.constant 0 : i32
    %c0_i32_1 = arith.constant 0 : i32
    return %arg0, %c0_i32, %c0_i32_0 : i32, i32, i32
  }
  func.func @transform_1(%arg0: i32, %arg1: i32) -> (i32, i32) {
    %c0_i32 = arith.constant 0 : i32
    %c0_i32_0 = arith.constant 0 : i32
    return %arg1, %c0_i32 : i32, i32
  }
  func.func @transform_2(%arg0: i32, %arg1: i32) -> (i32, i32) {
    %c0_i32 = arith.constant 0 : i32
    %c0_i32_0 = arith.constant 0 : i32
    return %arg0, %c0_i32 : i32, i32
  }
}

</mosaic_0001>

<llo_original>
// kernel: tpu_custom_call.1
$region0: #{tpu_custom_call.1}
  #allocation0 [shape = 'u32[]', space=smem, size = 0x4, offset = 0x4, fixed_abs, tag = 'smem constant byte address 0x4 - core index']
  #allocation1 [shape = 'u32[144,128]{1,0:T(1,128)}', space=vmem, size = 0x12000, scoped, tag = 'internal scratch']
  #allocation2 [shape = 'f32[16,128]{1,0:T(8,128)}', space=vmem, size = 0x2000, scoped, tag = 'scratch operand']
  %s0 = inlined_call_operand.hbm [shape: s32[1,1,16], index: 0, kind: input, shape index: {}]
  %s1 = inlined_call_operand.hbm [shape: f32[64,128], index: 1, kind: input, shape index: {}]
  %s2 = inlined_call_operand.hbm [shape: f32[16,128], index: 2, kind: output, shape index: {}]
  %s3 = sld [smem:[#allocation0]]
  $region34: #{tpu_custom_call.1} parent=0
    _
  %s5 = ssub.s32 1, %s3
  %s6 = scalar_select 0, %s5, %s3
  $region1: #{tpu_custom_call.1} parent=0
    #allocation3 [shape = 'u8[512]{0}', space=vmem, size = 0x400, scoped, tag = 'input window, operand 0, single buffered']
    #allocation4 [shape = 's32[1]{0}', space=sflag, size = 0x4, scoped, tag = 'scoped memory for tpu_custom_call.1']
    #allocation5 [shape = 's32[1]{0}', space=sflag, size = 0x4, scoped, tag = 'scoped memory for tpu_custom_call.1']
    #allocation6 [shape = 'u8[32768]{0}', space=vmem, size = 0x8000, scoped, tag = 'input window, operand 1, single buffered']
    #allocation7 [shape = 's32[1]{0}', space=sflag, size = 0x4, scoped, tag = 'scoped memory for tpu_custom_call.1']
    #allocation8 [shape = 'u8[8192]{0}', space=vmem, size = 0x2000, scoped, tag = 'output window, operand 0, single buffered']
    %7 = vsyncpa [#allocation4], 0
    %8 = vsyncpa [#allocation7], 0
    %9 = vsyncpa [#allocation5], 0
    // Predicated region
    $region2: #{tpu_custom_call.1} parent=1 // pred_check
      _
    $region3: #{tpu_custom_call.1} parent=1 // pred_check_branch
      %11 = sbr.rel (0) target = $region5
    $region4: #{tpu_custom_call.1} parent=1 // pred_region
      %s13 = ssub.s32 16, 16
      %14 = vsyncadd [#allocation4], %s13
      %s16 = sshll.u32 [#allocation3], 4
      %s17 = int_to_ptr.vmem [resolvable:$true] %s16
      %19 = dma.hbm_to_vmem [thread:$0]  %s0, 16, %s17, [#allocation4]
    $region5: #{tpu_custom_call.1} parent=1 // pred_fallthru
      _
    // Predicated region
    $region6: #{tpu_custom_call.1} parent=1 // pred_check
      _
    $region7: #{tpu_custom_call.1} parent=1 // pred_check_branch
      %21 = sbr.rel (0) target = $region9
    $region8: #{tpu_custom_call.1} parent=1 // pred_region
      %s23 = ssub.s32 1024, 1024
      %24 = vsyncadd [#allocation7], %s23
      %s25 = sshll.u32 [#allocation6], 4
      %s26 = int_to_ptr.vmem [resolvable:$true] %s25
      %31 = dma.hbm_to_vmem [thread:$0]  %s1, 1024, %s26, [#allocation7], 128, 128, 8
    $region9: #{tpu_custom_call.1} parent=1 // pred_fallthru
      _
    // Predicated region
    $region10: #{tpu_custom_call.1} parent=1 // pred_check
      _
    $region11: #{tpu_custom_call.1} parent=1 // pred_check_branch
      %33 = sbr.rel (0) target = $region13
    $region12: #{tpu_custom_call.1} parent=1 // pred_region
      %34 = dma.done [#allocation4], 16
    $region13: #{tpu_custom_call.1} parent=1 // pred_fallthru
      _
    // Predicated region
    $region14: #{tpu_custom_call.1} parent=1 // pred_check
      _
    $region15: #{tpu_custom_call.1} parent=1 // pred_check_branch
      %36 = sbr.rel (0) target = $region17
    $region16: #{tpu_custom_call.1} parent=1 // pred_region
      %37 = dma.done [#allocation7], 1024
    $region17: #{tpu_custom_call.1} parent=1 // pred_fallthru
      _
    %p38 = scmp.eq.s32.totalorder 0, 0
    // Predicated region
    $region18: #{tpu_custom_call.1} parent=1 // pred_check
      %p39 = pneg %p38
    $region19: #{tpu_custom_call.1} parent=1 // pred_check_branch
      %41 = sbr.rel (%p39) target = $region21
    $region20: #{tpu_custom_call.1} parent=1 // pred_region
      %42 = vst [vmem:[#allocation2] sm:$0xff] 0.0
      %43 = vst [vmem:[#allocation2 + $0x8] sm:$0xff] 0.0
    $region21: #{tpu_custom_call.1} parent=1 // pred_fallthru
      _
    %v44 = vld [vmem:[#allocation3] sm:$0x1]
    %s45 = smul.u32 0, 64
    %v46 = vstv %s45
    %v47 = vsub.s32 %v44, %v46
    %v48 = vlaneseq
    %v49 = vshrl.u32 %v48, 7
    %v50 = vadd.s32 %v49, 8
    %v51 = vadd.s32 %v49, 16
    %v52 = vadd.s32 %v49, 24
    %v53 = vadd.s32 %v49, 32
    %v54 = vadd.s32 %v49, 40
    %v55 = vadd.s32 %v49, 48
    %v56 = vadd.s32 %v49, 56
    %v57 = vlaneseq
    %v58 = vshrl.u32 %v57, 7
    %v59 = vsub.s32 0, %v58
    %v60 = vrot.slane %v47, %v59
    %vm61 = vcmp.eq.s32.totalorder %v49, %v60
    %vm62 = vcmp.eq.s32.totalorder %v50, %v60
    %vm63 = vcmp.eq.s32.totalorder %v51, %v60
    %vm64 = vcmp.eq.s32.totalorder %v52, %v60
    %vm65 = vcmp.eq.s32.totalorder %v53, %v60
    %vm66 = vcmp.eq.s32.totalorder %v54, %v60
    %vm67 = vcmp.eq.s32.totalorder %v55, %v60
    %vm68 = vcmp.eq.s32.totalorder %v56, %v60
    %v69 = vsel %vm61, 1, 0
    %v70 = vsel %vm62, 1, 0
    %v71 = vsel %vm63, 1, 0
    %v72 = vsel %vm64, 1, 0
    %v73 = vsel %vm65, 1, 0
    %v74 = vsel %vm66, 1, 0
    %v75 = vsel %vm67, 1, 0
    %v76 = vsel %vm68, 1, 0
    %v77 = vcvt.s32.f32 %v69
    %v78 = vcvt.s32.f32 %v70
    %v79 = vcvt.s32.f32 %v71
    %v80 = vcvt.s32.f32 %v72
    %v81 = vcvt.s32.f32 %v73
    %v82 = vcvt.s32.f32 %v74
    %v83 = vcvt.s32.f32 %v75
    %v84 = vcvt.s32.f32 %v76
    %v85 = vld [vmem:[#allocation2] sm:$0xff]
    %v86 = vld [vmem:[#allocation2 + $0x8] sm:$0xff]
    %v87 = vld [vmem:[#allocation6] sm:$0xff]
    %v88 = vld [vmem:[#allocation6 + $0x8] sm:$0xff]
    %v89 = vld [vmem:[#allocation6 + $0x10] sm:$0xff]
    %v90 = vld [vmem:[#allocation6 + $0x18] sm:$0xff]
    %v91 = vld [vmem:[#allocation6 + $0x20] sm:$0xff]
    %v92 = vld [vmem:[#allocation6 + $0x28] sm:$0xff]
    %v93 = vld [vmem:[#allocation6 + $0x30] sm:$0xff]
    %v94 = vld [vmem:[#allocation6 + $0x38] sm:$0xff]
    %95 = vxpose.xlu0.b32.start [1/16] %v77, 128
    %96 = vxpose.xlu0.b32.cont [2/16] %v78, 128
    %97 = vxpose.xlu0.b32.cont [3/16] %v79, 128
    %98 = vxpose.xlu0.b32.cont [4/16] %v80, 128
    %99 = vxpose.xlu0.b32.cont [5/16] %v81, 128
    %100 = vxpose.xlu0.b32.cont [6/16] %v82, 128
    %101 = vxpose.xlu0.b32.cont [7/16] %v83, 128
    %102 = vxpose.xlu0.b32.cont [8/16] %v84, 128
    %103 = vxpose.xlu0.b32.cont [9/16] 0.0, 128
    %104 = vxpose.xlu0.b32.cont [10/16] 0.0, 128
    %105 = vxpose.xlu0.b32.cont [11/16] 0.0, 128
    %106 = vxpose.xlu0.b32.cont [12/16] 0.0, 128
    %107 = vxpose.xlu0.b32.cont [13/16] 0.0, 128
    %108 = vxpose.xlu0.b32.cont [14/16] 0.0, 128
    %109 = vxpose.xlu0.b32.cont [15/16] 0.0, 128
    %110 = vxpose.xlu0.b32.end [16/16] 0.0, 128
    %v111 = vpop.trf.xlu0
    %v112 = vpop.trf.xlu0
    %v113 = vpop.trf.xlu0
    %v114 = vpop.trf.xlu0
    %v115 = vpop.trf.xlu0
    %v116 = vpop.trf.xlu0
    %v117 = vpop.trf.xlu0
    %v118 = vpop.trf.xlu0
    %v119 = vpop.trf.xlu0
    %v120 = vpop.trf.xlu0
    %v121 = vpop.trf.xlu0
    %v122 = vpop.trf.xlu0
    %v123 = vpop.trf.xlu0
    %v124 = vpop.trf.xlu0
    %v125 = vpop.trf.xlu0
    %v126 = vpop.trf.xlu0
    %vm127 = vcmask 523264
    %v129 = vsel %vm127, %v111, 0
    %v132 = vsel %vm127, %v112, 0
    %134 = vmatprep.subr.mxu0 0.0
    %v135 = vand.u32 %v87, 4294901760
    %136 = vmatpush1.msra.mxu0 %v135
    %137 = vmatprep.subr.mxu0 0.0
    %v138 = vand.u32 %v88, 4294901760
    %139 = vmatpush1.msra.mxu0 %v138
    %140 = vmatprep.subr.mxu0 0.0
    %v141 = vand.u32 %v89, 4294901760
    %142 = vmatpush1.msra.mxu0 %v141
    %143 = vmatprep.subr.mxu0 0.0
    %v144 = vand.u32 %v90, 4294901760
    %145 = vmatpush1.msra.mxu0 %v144
    %146 = vmatprep.subr.mxu0 0.0
    %v147 = vand.u32 %v91, 4294901760
    %148 = vmatpush1.msra.mxu0 %v147
    %149 = vmatprep.subr.mxu0 0.0
    %v150 = vand.u32 %v92, 4294901760
    %151 = vmatpush1.msra.mxu0 %v150
    %152 = vmatprep.subr.mxu0 0.0
    %v153 = vand.u32 %v93, 4294901760
    %154 = vmatpush1.msra.mxu0 %v153
    %155 = vmatprep.subr.mxu0 0.0
    %v156 = vand.u32 %v94, 4294901760
    %157 = vmatpush1.msra.mxu0 %v156
    %158 = vmatprep.subr.mxu0 0.0
    %159 = vmatpush1.msra.mxu0 0.0
    %160 = vmatprep.subr.mxu0 0.0
    %161 = vmatpush1.msra.mxu0 0.0
    %162 = vmatprep.subr.mxu0 0.0
    %163 = vmatpush1.msra.mxu0 0.0
    %164 = vmatprep.subr.mxu0 0.0
    %165 = vmatpush1.msra.mxu0 0.0
    %166 = vmatprep.subr.mxu0 0.0
    %167 = vmatpush1.msra.mxu0 0.0
    %168 = vmatprep.subr.mxu0 0.0
    %169 = vmatpush1.msra.mxu0 0.0
    %170 = vmatprep.subr.mxu0 0.0
    %171 = vmatpush1.msra.mxu0 0.0
    %172 = vmatprep.subr.mxu0 0.0
    %173 = vmatpush1.msra.mxu0 0.0
    %174 = vmatprep.subr.mxu0 0.0
    %175 = vmatpush1.msra.mxu0 0.0
    %176 = vmatprep.subr.mxu0 0.0
    %177 = vmatpush1.msra.mxu0 0.0
    %178 = vmatprep.subr.mxu0 0.0
    %179 = vmatpush1.msra.mxu0 0.0
    %180 = vmatprep.subr.mxu0 0.0
    %181 = vmatpush1.msra.mxu0 0.0
    %182 = vmatprep.subr.mxu0 0.0
    %183 = vmatpush1.msra.mxu0 0.0
    %184 = vmatprep.subr.mxu0 0.0
    %185 = vmatpush1.msra.mxu0 0.0
    %186 = vmatprep.subr.mxu0 0.0
    %187 = vmatpush1.msra.mxu0 0.0
    %188 = vmatprep.subr.mxu0 0.0
    %189 = vmatpush1.msra.mxu0 0.0
    %190 = vmatprep.subr.mxu0 0.0
    %191 = vmatpush1.msra.mxu0 0.0
    %192 = vmatprep.subr.mxu0 0.0
    %193 = vmatpush1.msra.mxu0 0.0
    %194 = vmatprep.subr.mxu0 0.0
    %195 = vmatpush1.msra.mxu0 0.0
    %196 = vmatprep.subr.mxu0 0.0
    %197 = vmatpush1.msra.mxu0 0.0
    %198 = vmatprep.subr.mxu0 0.0
    %199 = vmatpush1.msra.mxu0 0.0
    %200 = vmatprep.subr.mxu0 0.0
    %201 = vmatpush1.msra.mxu0 0.0
    %202 = vmatprep.subr.mxu0 0.0
    %203 = vmatpush1.msra.mxu0 0.0
    %204 = vmatprep.subr.mxu0 0.0
    %205 = vmatpush1.msra.mxu0 0.0
    %206 = vmatprep.mubr.f32.mxu0 0.0
    %v207 = vand.u32 %v129, 4294901760
    %v208 = vsub.f32 %v129, %v207
    %v209 = vand.u32 %v208, 4294901760
    %v210 = vsub.f32 %v208, %v209
    %v211 = vand.u32 %v210, 4294901760
    %212 = vmatmul.mubr.f32.gmra.mrb[0].mxu0 %v211
    %v213 = vpop.f32.mrb[0].mxu0
    %v214 = vadd.f32 0.0, %v213
    %v215 = vpop.f32.mrb[0].mxu0
    %216 = vmatprep.mubr.f32.mxu0 0.0
    %v217 = vand.u32 %v132, 4294901760
    %v218 = vsub.f32 %v132, %v217
    %v219 = vand.u32 %v218, 4294901760
    %v220 = vsub.f32 %v218, %v219
    %v221 = vand.u32 %v220, 4294901760
    %222 = vmatmul.mubr.f32.gmra.mrb[0].mxu0 %v221
    %v223 = vpop.f32.mrb[0].mxu0
    %v224 = vadd.f32 0.0, %v223
    %v225 = vpop.f32.mrb[0].mxu0
    %226 = vdwg.mxu0
    %227 = vmatprep.subr.mxu0 0.0
    %v228 = vand.u32 %v87, 4294901760
    %v229 = vsub.f32 %v87, %v228
    %v230 = vand.u32 %v229, 4294901760
    %v231 = vsub.f32 %v229, %v230
    %v232 = vand.u32 %v231, 4294901760
    %233 = vmatpush1.msra.mxu0 %v232
    %234 = vmatprep.subr.mxu0 0.0
    %v235 = vand.u32 %v88, 4294901760
    %v236 = vsub.f32 %v88, %v235
    %v237 = vand.u32 %v236, 4294901760
    %v238 = vsub.f32 %v236, %v237
    %v239 = vand.u32 %v238, 4294901760
    %240 = vmatpush1.msra.mxu0 %v239
    %241 = vmatprep.subr.mxu0 0.0
    %v242 = vand.u32 %v89, 4294901760
    %v243 = vsub.f32 %v89, %v242
    %v244 = vand.u32 %v243, 4294901760
    %v245 = vsub.f32 %v243, %v244
    %v246 = vand.u32 %v245, 4294901760
    %247 = vmatpush1.msra.mxu0 %v246
    %248 = vmatprep.subr.mxu0 0.0
    %v249 = vand.u32 %v90, 4294901760
    %v250 = vsub.f32 %v90, %v249
    %v251 = vand.u32 %v250, 4294901760
    %v252 = vsub.f32 %v250, %v251
    %v253 = vand.u32 %v252, 4294901760
    %254 = vmatpush1.msra.mxu0 %v253
    %255 = vmatprep.subr.mxu0 0.0
    %v256 = vand.u32 %v91, 4294901760
    %v257 = vsub.f32 %v91, %v256
    %v258 = vand.u32 %v257, 4294901760
    %v259 = vsub.f32 %v257, %v258
    %v260 = vand.u32 %v259, 4294901760
    %261 = vmatpush1.msra.mxu0 %v260
    %262 = vmatprep.subr.mxu0 0.0
    %v263 = vand.u32 %v92, 4294901760
    %v264 = vsub.f32 %v92, %v263
    %v265 = vand.u32 %v264, 4294901760
    %v266 = vsub.f32 %v264, %v265
    %v267 = vand.u32 %v266, 4294901760
    %268 = vmatpush1.msra.mxu0 %v267
    %269 = vmatprep.subr.mxu0 0.0
    %v270 = vand.u32 %v93, 4294901760
    %v271 = vsub.f32 %v93, %v270
    %v272 = vand.u32 %v271, 4294901760
    %v273 = vsub.f32 %v271, %v272
    %v274 = vand.u32 %v273, 4294901760
    %275 = vmatpush1.msra.mxu0 %v274
    %276 = vmatprep.subr.mxu0 0.0
    %v277 = vand.u32 %v94, 4294901760
    %v278 = vsub.f32 %v94, %v277
    %v279 = vand.u32 %v278, 4294901760
    %v280 = vsub.f32 %v278, %v279
    %v281 = vand.u32 %v280, 4294901760
    %282 = vmatpush1.msra.mxu0 %v281
    %283 = vmatprep.subr.mxu0 0.0
    %284 = vmatpush1.msra.mxu0 0.0
    %285 = vmatprep.subr.mxu0 0.0
    %286 = vmatpush1.msra.mxu0 0.0
    %287 = vmatprep.subr.mxu0 0.0
    %288 = vmatpush1.msra.mxu0 0.0
    %289 = vmatprep.subr.mxu0 0.0
    %290 = vmatpush1.msra.mxu0 0.0
    %291 = vmatprep.subr.mxu0 0.0
    %292 = vmatpush1.msra.mxu0 0.0
    %293 = vmatprep.subr.mxu0 0.0
    %294 = vmatpush1.msra.mxu0 0.0
    %295 = vmatprep.subr.mxu0 0.0
    %296 = vmatpush1.msra.mxu0 0.0
    %297 = vmatprep.subr.mxu0 0.0
    %298 = vmatpush1.msra.mxu0 0.0
    %299 = vmatprep.subr.mxu0 0.0
    %300 = vmatpush1.msra.mxu0 0.0
    %301 = vmatprep.subr.mxu0 0.0
    %302 = vmatpush1.msra.mxu0 0.0
    %303 = vmatprep.subr.mxu0 0.0
    %304 = vmatpush1.msra.mxu0 0.0
    %305 = vmatprep.subr.mxu0 0.0
    %306 = vmatpush1.msra.mxu0 0.0
    %307 = vmatprep.subr.mxu0 0.0
    %308 = vmatpush1.msra.mxu0 0.0
    %309 = vmatprep.subr.mxu0 0.0
    %310 = vmatpush1.msra.mxu0 0.0
    %311 = vmatprep.subr.mxu0 0.0
    %312 = vmatpush1.msra.mxu0 0.0
    %313 = vmatprep.subr.mxu0 0.0
    %314 = vmatpush1.msra.mxu0 0.0
    %315 = vmatprep.subr.mxu0 0.0
    %316 = vmatpush1.msra.mxu0 0.0
    %317 = vmatprep.subr.mxu0 0.0
    %318 = vmatpush1.msra.mxu0 0.0
    %319 = vmatprep.subr.mxu0 0.0
    %320 = vmatpush1.msra.mxu0 0.0
    %321 = vmatprep.subr.mxu0 0.0
    %322 = vmatpush1.msra.mxu0 0.0
    %323 = vmatprep.subr.mxu0 0.0
    %324 = vmatpush1.msra.mxu0 0.0
    %325 = vmatprep.subr.mxu0 0.0
    %326 = vmatpush1.msra.mxu0 0.0
    %327 = vmatprep.subr.mxu0 0.0
    %328 = vmatpush1.msra.mxu0 0.0
    %329 = vmatprep.subr.mxu0 0.0
    %330 = vmatpush1.msra.mxu0 0.0
    %331 = vmatprep.mubr.f32.mxu0 0.0
    %v332 = vand.u32 %v129, 4294901760
    %333 = vmatmul.mubr.f32.gmra.mrb[0].mxu0 %v332
    %v334 = vpop.f32.mrb[0].mxu0
    %v335 = vadd.f32 %v214, %v334
    %v336 = vpop.f32.mrb[0].mxu0
    %337 = vmatprep.mubr.f32.mxu0 0.0
    %v338 = vand.u32 %v132, 4294901760
    %339 = vmatmul.mubr.f32.gmra.mrb[0].mxu0 %v338
    %v340 = vpop.f32.mrb[0].mxu0
    %v341 = vadd.f32 %v224, %v340
    %v342 = vpop.f32.mrb[0].mxu0
    %343 = vdwg.mxu0
    %344 = vmatprep.subr.mxu0 0.0
    %v345 = vand.u32 %v87, 4294901760
    %v346 = vsub.f32 %v87, %v345
    %347 = vmatpush1.msra.mxu0 %v346
    %348 = vmatprep.subr.mxu0 0.0
    %v349 = vand.u32 %v88, 4294901760
    %v350 = vsub.f32 %v88, %v349
    %351 = vmatpush1.msra.mxu0 %v350
    %352 = vmatprep.subr.mxu0 0.0
    %v353 = vand.u32 %v89, 4294901760
    %v354 = vsub.f32 %v89, %v353
    %355 = vmatpush1.msra.mxu0 %v354
    %356 = vmatprep.subr.mxu0 0.0
    %v357 = vand.u32 %v90, 4294901760
    %v358 = vsub.f32 %v90, %v357
    %359 = vmatpush1.msra.mxu0 %v358
    %360 = vmatprep.subr.mxu0 0.0
    %v361 = vand.u32 %v91, 4294901760
    %v362 = vsub.f32 %v91, %v361
    %363 = vmatpush1.msra.mxu0 %v362
    %364 = vmatprep.subr.mxu0 0.0
    %v365 = vand.u32 %v92, 4294901760
    %v366 = vsub.f32 %v92, %v365
    %367 = vmatpush1.msra.mxu0 %v366
    %368 = vmatprep.subr.mxu0 0.0
    %v369 = vand.u32 %v93, 4294901760
    %v370 = vsub.f32 %v93, %v369
    %371 = vmatpush1.msra.mxu0 %v370
    %372 = vmatprep.subr.mxu0 0.0
    %v373 = vand.u32 %v94, 4294901760
    %v374 = vsub.f32 %v94, %v373
    %375 = vmatpush1.msra.mxu0 %v374
    %376 = vmatprep.subr.mxu0 0.0
    %377 = vmatpush1.msra.mxu0 0.0
    %378 = vmatprep.subr.mxu0 0.0
    %379 = vmatpush1.msra.mxu0 0.0
    %380 = vmatprep.subr.mxu0 0.0
    %381 = vmatpush1.msra.mxu0 0.0
    %382 = vmatprep.subr.mxu0 0.0
    %383 = vmatpush1.msra.mxu0 0.0
    %384 = vmatprep.subr.mxu0 0.0
    %385 = vmatpush1.msra.mxu0 0.0
    %386 = vmatprep.subr.mxu0 0.0
    %387 = vmatpush1.msra.mxu0 0.0
    %388 = vmatprep.subr.mxu0 0.0
    %389 = vmatpush1.msra.mxu0 0.0
    %390 = vmatprep.subr.mxu0 0.0
    %391 = vmatpush1.msra.mxu0 0.0
    %392 = vmatprep.subr.mxu0 0.0
    %393 = vmatpush1.msra.mxu0 0.0
    %394 = vmatprep.subr.mxu0 0.0
    %395 = vmatpush1.msra.mxu0 0.0
    %396 = vmatprep.subr.mxu0 0.0
    %397 = vmatpush1.msra.mxu0 0.0
    %398 = vmatprep.subr.mxu0 0.0
    %399 = vmatpush1.msra.mxu0 0.0
    %400 = vmatprep.subr.mxu0 0.0
    %401 = vmatpush1.msra.mxu0 0.0
    %402 = vmatprep.subr.mxu0 0.0
    %403 = vmatpush1.msra.mxu0 0.0
    %404 = vmatprep.subr.mxu0 0.0
    %405 = vmatpush1.msra.mxu0 0.0
    %406 = vmatprep.subr.mxu0 0.0
    %407 = vmatpush1.msra.mxu0 0.0
    %408 = vmatprep.subr.mxu0 0.0
    %409 = vmatpush1.msra.mxu0 0.0
    %410 = vmatprep.subr.mxu0 0.0
    %411 = vmatpush1.msra.mxu0 0.0
    %412 = vmatprep.subr.mxu0 0.0
    %413 = vmatpush1.msra.mxu0 0.0
    %414 = vmatprep.subr.mxu0 0.0
    %415 = vmatpush1.msra.mxu0 0.0
    %416 = vmatprep.subr.mxu0 0.0
    %417 = vmatpush1.msra.mxu0 0.0
    %418 = vmatprep.subr.mxu0 0.0
    %419 = vmatpush1.msra.mxu0 0.0
    %420 = vmatprep.subr.mxu0 0.0
    %421 = vmatpush1.msra.mxu0 0.0
    %422 = vmatprep.subr.mxu0 0.0
    %423 = vmatpush1.msra.mxu0 0.0
    %424 = vmatprep.mubr.f32.mxu0 0.0
    %v425 = vand.u32 %v129, 4294901760
    %v426 = vsub.f32 %v129, %v425
    %427 = vmatmul.mubr.f32.gmra.mrb[0].mxu0 %v426
    %v428 = vpop.f32.mrb[0].mxu0
    %v429 = vadd.f32 %v335, %v428
    %v430 = vpop.f32.mrb[0].mxu0
    %431 = vmatprep.mubr.f32.mxu0 0.0
    %v432 = vand.u32 %v132, 4294901760
    %v433 = vsub.f32 %v132, %v432
    %434 = vmatmul.mubr.f32.gmra.mrb[0].mxu0 %v433
    %v435 = vpop.f32.mrb[0].mxu0
    %v436 = vadd.f32 %v341, %v435
    %v437 = vpop.f32.mrb[0].mxu0
    %438 = vdwg.mxu0
    %439 = vmatprep.subr.mxu0 0.0
    %v440 = vand.u32 %v87, 4294901760
    %441 = vmatpush1.msra.mxu0 %v440
    %442 = vmatprep.subr.mxu0 0.0
    %v443 = vand.u32 %v88, 4294901760
    %444 = vmatpush1.msra.mxu0 %v443
    %445 = vmatprep.subr.mxu0 0.0
    %v446 = vand.u32 %v89, 4294901760
    %447 = vmatpush1.msra.mxu0 %v446
    %448 = vmatprep.subr.mxu0 0.0
    %v449 = vand.u32 %v90, 4294901760
    %450 = vmatpush1.msra.mxu0 %v449
    %451 = vmatprep.subr.mxu0 0.0
    %v452 = vand.u32 %v91, 4294901760
    %453 = vmatpush1.msra.mxu0 %v452
    %454 = vmatprep.subr.mxu0 0.0
    %v455 = vand.u32 %v92, 4294901760
    %456 = vmatpush1.msra.mxu0 %v455
    %457 = vmatprep.subr.mxu0 0.0
    %v458 = vand.u32 %v93, 4294901760
    %459 = vmatpush1.msra.mxu0 %v458
    %460 = vmatprep.subr.mxu0 0.0
    %v461 = vand.u32 %v94, 4294901760
    %462 = vmatpush1.msra.mxu0 %v461
    %463 = vmatprep.subr.mxu0 0.0
    %464 = vmatpush1.msra.mxu0 0.0
    %465 = vmatprep.subr.mxu0 0.0
    %466 = vmatpush1.msra.mxu0 0.0
    %467 = vmatprep.subr.mxu0 0.0
    %468 = vmatpush1.msra.mxu0 0.0
    %469 = vmatprep.subr.mxu0 0.0
    %470 = vmatpush1.msra.mxu0 0.0
    %471 = vmatprep.subr.mxu0 0.0
    %472 = vmatpush1.msra.mxu0 0.0
    %473 = vmatprep.subr.mxu0 0.0
    %474 = vmatpush1.msra.mxu0 0.0
    %475 = vmatprep.subr.mxu0 0.0
    %476 = vmatpush1.msra.mxu0 0.0
    %477 = vmatprep.subr.mxu0 0.0
    %478 = vmatpush1.msra.mxu0 0.0
    %479 = vmatprep.subr.mxu0 0.0
    %480 = vmatpush1.msra.mxu0 0.0
    %481 = vmatprep.subr.mxu0 0.0
    %482 = vmatpush1.msra.mxu0 0.0
    %483 = vmatprep.subr.mxu0 0.0
    %484 = vmatpush1.msra.mxu0 0.0
    %485 = vmatprep.subr.mxu0 0.0
    %486 = vmatpush1.msra.mxu0 0.0
    %487 = vmatprep.subr.mxu0 0.0
    %488 = vmatpush1.msra.mxu0 0.0
    %489 = vmatprep.subr.mxu0 0.0
    %490 = vmatpush1.msra.mxu0 0.0
    %491 = vmatprep.subr.mxu0 0.0
    %492 = vmatpush1.msra.mxu0 0.0
    %493 = vmatprep.subr.mxu0 0.0
    %494 = vmatpush1.msra.mxu0 0.0
    %495 = vmatprep.subr.mxu0 0.0
    %496 = vmatpush1.msra.mxu0 0.0
    %497 = vmatprep.subr.mxu0 0.0
    %498 = vmatpush1.msra.mxu0 0.0
    %499 = vmatprep.subr.mxu0 0.0
    %500 = vmatpush1.msra.mxu0 0.0
    %501 = vmatprep.subr.mxu0 0.0
    %502 = vmatpush1.msra.mxu0 0.0
    %503 = vmatprep.subr.mxu0 0.0
    %504 = vmatpush1.msra.mxu0 0.0
    %505 = vmatprep.subr.mxu0 0.0
    %506 = vmatpush1.msra.mxu0 0.0
    %507 = vmatprep.subr.mxu0 0.0
    %508 = vmatpush1.msra.mxu0 0.0
    %509 = vmatprep.subr.mxu0 0.0
    %510 = vmatpush1.msra.mxu0 0.0
    %511 = vmatprep.mubr.f32.mxu0 0.0
    %v512 = vand.u32 %v129, 4294901760
    %v513 = vsub.f32 %v129, %v512
    %v514 = vand.u32 %v513, 4294901760
    %515 = vmatmul.mubr.f32.gmra.mrb[0].mxu0 %v514
    %v516 = vpop.f32.mrb[0].mxu0
    %v517 = vadd.f32 %v429, %v516
    %v518 = vpop.f32.mrb[0].mxu0
    %519 = vmatprep.mubr.f32.mxu0 0.0
    %v520 = vand.u32 %v132, 4294901760
    %v521 = vsub.f32 %v132, %v520
    %v522 = vand.u32 %v521, 4294901760
    %523 = vmatmul.mubr.f32.gmra.mrb[0].mxu0 %v522
    %v524 = vpop.f32.mrb[0].mxu0
    %v525 = vadd.f32 %v436, %v524
    %v526 = vpop.f32.mrb[0].mxu0
    %527 = vdwg.mxu0
    %528 = vmatprep.subr.mxu0 0.0
    %v529 = vand.u32 %v87, 4294901760
    %v530 = vsub.f32 %v87, %v529
    %v531 = vand.u32 %v530, 4294901760
    %532 = vmatpush1.msra.mxu0 %v531
    %533 = vmatprep.subr.mxu0 0.0
    %v534 = vand.u32 %v88, 4294901760
    %v535 = vsub.f32 %v88, %v534
    %v536 = vand.u32 %v535, 4294901760
    %537 = vmatpush1.msra.mxu0 %v536
    %538 = vmatprep.subr.mxu0 0.0
    %v539 = vand.u32 %v89, 4294901760
    %v540 = vsub.f32 %v89, %v539
    %v541 = vand.u32 %v540, 4294901760
    %542 = vmatpush1.msra.mxu0 %v541
    %543 = vmatprep.subr.mxu0 0.0
    %v544 = vand.u32 %v90, 4294901760
    %v545 = vsub.f32 %v90, %v544
    %v546 = vand.u32 %v545, 4294901760
    %547 = vmatpush1.msra.mxu0 %v546
    %548 = vmatprep.subr.mxu0 0.0
    %v549 = vand.u32 %v91, 4294901760
    %v550 = vsub.f32 %v91, %v549
    %v551 = vand.u32 %v550, 4294901760
    %552 = vmatpush1.msra.mxu0 %v551
    %553 = vmatprep.subr.mxu0 0.0
    %v554 = vand.u32 %v92, 4294901760
    %v555 = vsub.f32 %v92, %v554
    %v556 = vand.u32 %v555, 4294901760
    %557 = vmatpush1.msra.mxu0 %v556
    %558 = vmatprep.subr.mxu0 0.0
    %v559 = vand.u32 %v93, 4294901760
    %v560 = vsub.f32 %v93, %v559
    %v561 = vand.u32 %v560, 4294901760
    %562 = vmatpush1.msra.mxu0 %v561
    %563 = vmatprep.subr.mxu0 0.0
    %v564 = vand.u32 %v94, 4294901760
    %v565 = vsub.f32 %v94, %v564
    %v566 = vand.u32 %v565, 4294901760
    %567 = vmatpush1.msra.mxu0 %v566
    %568 = vmatprep.subr.mxu0 0.0
    %569 = vmatpush1.msra.mxu0 0.0
    %570 = vmatprep.subr.mxu0 0.0
    %571 = vmatpush1.msra.mxu0 0.0
    %572 = vmatprep.subr.mxu0 0.0
    %573 = vmatpush1.msra.mxu0 0.0
    %574 = vmatprep.subr.mxu0 0.0
    %575 = vmatpush1.msra.mxu0 0.0
    %576 = vmatprep.subr.mxu0 0.0
    %577 = vmatpush1.msra.mxu0 0.0
    %578 = vmatprep.subr.mxu0 0.0
    %579 = vmatpush1.msra.mxu0 0.0
    %580 = vmatprep.subr.mxu0 0.0
    %581 = vmatpush1.msra.mxu0 0.0
    %582 = vmatprep.subr.mxu0 0.0
    %583 = vmatpush1.msra.mxu0 0.0
    %584 = vmatprep.subr.mxu0 0.0
    %585 = vmatpush1.msra.mxu0 0.0
    %586 = vmatprep.subr.mxu0 0.0
    %587 = vmatpush1.msra.mxu0 0.0
    %588 = vmatprep.subr.mxu0 0.0
    %589 = vmatpush1.msra.mxu0 0.0
    %590 = vmatprep.subr.mxu0 0.0
    %591 = vmatpush1.msra.mxu0 0.0
    %592 = vmatprep.subr.mxu0 0.0
    %593 = vmatpush1.msra.mxu0 0.0
    %594 = vmatprep.subr.mxu0 0.0
    %595 = vmatpush1.msra.mxu0 0.0
    %596 = vmatprep.subr.mxu0 0.0
    %597 = vmatpush1.msra.mxu0 0.0
    %598 = vmatprep.subr.mxu0 0.0
    %599 = vmatpush1.msra.mxu0 0.0
    %600 = vmatprep.subr.mxu0 0.0
    %601 = vmatpush1.msra.mxu0 0.0
    %602 = vmatprep.subr.mxu0 0.0
    %603 = vmatpush1.msra.mxu0 0.0
    %604 = vmatprep.subr.mxu0 0.0
    %605 = vmatpush1.msra.mxu0 0.0
    %606 = vmatprep.subr.mxu0 0.0
    %607 = vmatpush1.msra.mxu0 0.0
    %608 = vmatprep.subr.mxu0 0.0
    %609 = vmatpush1.msra.mxu0 0.0
    %610 = vmatprep.subr.mxu0 0.0
    %611 = vmatpush1.msra.mxu0 0.0
    %612 = vmatprep.subr.mxu0 0.0
    %613 = vmatpush1.msra.mxu0 0.0
    %614 = vmatprep.subr.mxu0 0.0
    %615 = vmatpush1.msra.mxu0 0.0
    %616 = vmatprep.mubr.f32.mxu0 0.0
    %v617 = vand.u32 %v129, 4294901760
    %618 = vmatmul.mubr.f32.gmra.mrb[0].mxu0 %v617
    %v619 = vpop.f32.mrb[0].mxu0
    %v620 = vadd.f32 %v517, %v619
    %v621 = vpop.f32.mrb[0].mxu0
    %622 = vmatprep.mubr.f32.mxu0 0.0
    %v623 = vand.u32 %v132, 4294901760
    %624 = vmatmul.mubr.f32.gmra.mrb[0].mxu0 %v623
    %v625 = vpop.f32.mrb[0].mxu0
    %v626 = vadd.f32 %v525, %v625
    %v627 = vpop.f32.mrb[0].mxu0
    %628 = vdwg.mxu0
    %629 = vmatprep.subr.mxu0 0.0
    %v630 = vand.u32 %v87, 4294901760
    %631 = vmatpush1.msra.mxu0 %v630
    %632 = vmatprep.subr.mxu0 0.0
    %v633 = vand.u32 %v88, 4294901760
    %634 = vmatpush1.msra.mxu0 %v633
    %635 = vmatprep.subr.mxu0 0.0
    %v636 = vand.u32 %v89, 4294901760
    %637 = vmatpush1.msra.mxu0 %v636
    %638 = vmatprep.subr.mxu0 0.0
    %v639 = vand.u32 %v90, 4294901760
    %640 = vmatpush1.msra.mxu0 %v639
    %641 = vmatprep.subr.mxu0 0.0
    %v642 = vand.u32 %v91, 4294901760
    %643 = vmatpush1.msra.mxu0 %v642
    %644 = vmatprep.subr.mxu0 0.0
    %v645 = vand.u32 %v92, 4294901760
    %646 = vmatpush1.msra.mxu0 %v645
    %647 = vmatprep.subr.mxu0 0.0
    %v648 = vand.u32 %v93, 4294901760
    %649 = vmatpush1.msra.mxu0 %v648
    %650 = vmatprep.subr.mxu0 0.0
    %v651 = vand.u32 %v94, 4294901760
    %652 = vmatpush1.msra.mxu0 %v651
    %653 = vmatprep.subr.mxu0 0.0
    %654 = vmatpush1.msra.mxu0 0.0
    %655 = vmatprep.subr.mxu0 0.0
    %656 = vmatpush1.msra.mxu0 0.0
    %657 = vmatprep.subr.mxu0 0.0
    %658 = vmatpush1.msra.mxu0 0.0
    %659 = vmatprep.subr.mxu0 0.0
    %660 = vmatpush1.msra.mxu0 0.0
    %661 = vmatprep.subr.mxu0 0.0
    %662 = vmatpush1.msra.mxu0 0.0
    %663 = vmatprep.subr.mxu0 0.0
    %664 = vmatpush1.msra.mxu0 0.0
    %665 = vmatprep.subr.mxu0 0.0
    %666 = vmatpush1.msra.mxu0 0.0
    %667 = vmatprep.subr.mxu0 0.0
    %668 = vmatpush1.msra.mxu0 0.0
    %669 = vmatprep.subr.mxu0 0.0
    %670 = vmatpush1.msra.mxu0 0.0
    %671 = vmatprep.subr.mxu0 0.0
    %672 = vmatpush1.msra.mxu0 0.0
    %673 = vmatprep.subr.mxu0 0.0
    %674 = vmatpush1.msra.mxu0 0.0
    %675 = vmatprep.subr.mxu0 0.0
    %676 = vmatpush1.msra.mxu0 0.0
    %677 = vmatprep.subr.mxu0 0.0
    %678 = vmatpush1.msra.mxu0 0.0
    %679 = vmatprep.subr.mxu0 0.0
    %680 = vmatpush1.msra.mxu0 0.0
    %681 = vmatprep.subr.mxu0 0.0
    %682 = vmatpush1.msra.mxu0 0.0
    %683 = vmatprep.subr.mxu0 0.0
    %684 = vmatpush1.msra.mxu0 0.0
    %685 = vmatprep.subr.mxu0 0.0
    %686 = vmatpush1.msra.mxu0 0.0
    %687 = vmatprep.subr.mxu0 0.0
    %688 = vmatpush1.msra.mxu0 0.0
    %689 = vmatprep.subr.mxu0 0.0
    %690 = vmatpush1.msra.mxu0 0.0
    %691 = vmatprep.subr.mxu0 0.0
    %692 = vmatpush1.msra.mxu0 0.0
    %693 = vmatprep.subr.mxu0 0.0
    %694 = vmatpush1.msra.mxu0 0.0
    %695 = vmatprep.subr.mxu0 0.0
    %696 = vmatpush1.msra.mxu0 0.0
    %697 = vmatprep.subr.mxu0 0.0
    %698 = vmatpush1.msra.mxu0 0.0
    %699 = vmatprep.subr.mxu0 0.0
    %700 = vmatpush1.msra.mxu0 0.0
    %701 = vmatprep.mubr.f32.mxu0 0.0
    %v702 = vand.u32 %v129, 4294901760
    %703 = vmatmul.mubr.f32.gmra.mrb[0].mxu0 %v702
    %v704 = vpop.f32.mrb[0].mxu0
    %v705 = vadd.f32 %v620, %v704
    %v706 = vpop.f32.mrb[0].mxu0
    %707 = vmatprep.mubr.f32.mxu0 0.0
    %v708 = vand.u32 %v132, 4294901760
    %709 = vmatmul.mubr.f32.gmra.mrb[0].mxu0 %v708
    %v710 = vpop.f32.mrb[0].mxu0
    %v711 = vadd.f32 %v626, %v710
    %v712 = vpop.f32.mrb[0].mxu0
    %713 = vdwg.mxu0
    %v714 = vadd.f32 %v85, %v705
    %v715 = vadd.f32 %v86, %v711
    %716 = vst [vmem:[#allocation2] sm:$0xff] %v714
    %717 = vst [vmem:[#allocation2 + $0x8] sm:$0xff] %v715
    // Predicated region
    $region22: #{tpu_custom_call.1} parent=1 // pred_check
      %p718 = pneg %p38
    $region23: #{tpu_custom_call.1} parent=1 // pred_check_branch
      %720 = sbr.rel (%p718) target = $region25
    $region24: #{tpu_custom_call.1} parent=1 // pred_region
      %v721 = vld [vmem:[#allocation2] sm:$0xff]
      %v722 = vld [vmem:[#allocation2 + $0x8] sm:$0xff]
      %723 = vst [vmem:[#allocation8] sm:$0xff] %v721
      %724 = vst [vmem:[#allocation8 + $0x8] sm:$0xff] %v722
    $region25: #{tpu_custom_call.1} parent=1 // pred_fallthru
      _
    // Predicated region
    $region26: #{tpu_custom_call.1} parent=1 // pred_check
      _
    $region27: #{tpu_custom_call.1} parent=1 // pred_check_branch
      %726 = sbr.rel (0) target = $region29
    $region28: #{tpu_custom_call.1} parent=1 // pred_region
      %s728 = ssub.s32 256, 256
      %729 = vsyncadd [#allocation5], %s728
      %s730 = sshll.u32 [#allocation8], 4
      %s731 = int_to_ptr.vmem [resolvable:$true] %s730
      %736 = dma.vmem_to_hbm [thread:$0]  %s731, 256, %s2, [#allocation5], 128, 128, 8
    $region29: #{tpu_custom_call.1} parent=1 // pred_fallthru
      _
    // Predicated region
    $region30: #{tpu_custom_call.1} parent=1 // pred_check
      _
    $region31: #{tpu_custom_call.1} parent=1 // pred_check_branch
      %738 = sbr.rel (0) target = $region33
    $region32: #{tpu_custom_call.1} parent=1 // pred_region
      %739 = dma.done [#allocation5], 256
    $region33: #{tpu_custom_call.1} parent=1 // pred_fallthru
      _
    %740 = vsyncpa [#allocation4], 1
    %741 = vsyncpa [#allocation7], 1
    %742 = vsyncpa [#allocation5], 1

</llo_original>
